<compile_context>
chip_gen: v5e
topology: v5e:2x2
jax: 0.10.0
libtpu: 0.0.40
codegen_flags: <defaults>
</compile_context>

<pallas_src>
import functools

import jax
import jax.numpy as jnp
from jax.experimental import pallas as pl
from jax.experimental.pallas import tpu as pltpu

# Blur buffer from the PyTorch module (weight[:, :, 0, :] = blur_filter).
BLUR_FILTER = (1 / 4, 1 / 8, 1 / 16, 1 / 8, 1 / 16, 1 / 8, 1 / 16, 1 / 8, 1 / 16)

# Fused-gather path is only taken when the whole padded feature table is tiny vs VMEM.
_FUSE_MAX_ROWS = 512
_FUSE_MAX_TABLE_BYTES = 1 << 20


def _round_up(n, m):
    return ((n + m - 1) // m) * m


def _sublane_multiple(itemsize):
    # dtype-native sublane tile: 8 rows (4-byte), 16 (2-byte), 32 (1-byte).
    return max(8, 32 // int(itemsize))


def _vmem_budget_and_limit():
    """Generation-aware VMEM budgets (v5e/v6e: 128 MiB, v7x: 64 MiB per TensorCore)."""
    cap = None
    try:
        cap = getattr(pltpu.get_tpu_info(), "vmem_capacity_bytes", None)
    except Exception:
        cap = None
    if not cap:
        cap = 64 << 20  # conservative fallback = v7x per-core capacity
    return int(cap * 0.50), int(cap * 0.70)


def _choose_tile_m(requested_tm, n_faces, channels, itemsize, sub, budget):
    """Big tiles (HBM-bound kernel), clamped by face count, megacore balance, VMEM budget."""
    tm = min(_round_up(requested_tm, sub), _round_up(max(n_faces, sub), sub))

    # v7x megacore: keep >=4 grid steps when there is enough work so the ("parallel",)
    # grid axis load-balances across the 2 TensorCores (no-op for small problems).
    if n_faces >= 4 * 1024:
        tm = min(tm, _round_up(pl.cdiv(n_faces, 4), sub))

    def footprint(t):
        g = 9 * t * channels * itemsize     # gathered block
        inv = t * 128 * 4                   # (t, 1) f32, lane-padded to 128
        out = t * channels * itemsize       # output block
        return 2 * (g + inv + out)          # double-buffered

    while tm > sub and footprint(tm) > budget:
        tm = max(sub, _round_up(tm // 2, sub))

    # Re-balance so the last (padded) tile carries minimal wasted rows.
    n_tiles = pl.cdiv(max(n_faces, 1), tm)
    tm = max(sub, _round_up(pl.cdiv(n_faces, n_tiles), sub))
    return tm


def _blur_kernel(g_ref, inv_ref, o_ref):
    # g_ref:   (9, TM, C)  gathered neighbor features (zero rows at pad positions)
    # inv_ref: (TM, 1)     precomputed 1 / correction_factor (f32)
    # o_ref:   (TM, C)
    # Serial 9-tap accumulator on purpose: pure VALU slack on a memory-bound kernel.
    acc = g_ref[0].astype(jnp.float32) * BLUR_FILTER[0]
    for k in range(1, 9):
        acc = acc + g_ref[k].astype(jnp.float32) * BLUR_FILTER[k]
    o_ref[...] = (acc * inv_ref[...]).astype(o_ref.dtype)


def _blur_fused_gather_kernel(x_ref, idx_ref, inv_ref, o_ref):
    # x_ref:   (T, C)      whole feature table, VMEM-resident across grid steps
    # idx_ref: (9, TM, 1)  int32 row index into x per (tap, face); indices pointing at the
    #                      zero-padded / out-of-range sentinel contribute zero.
    # inv_ref: (TM, 1)     1 / correction_factor (f32)
    # o_ref:   (TM, C)
    tm = o_ref.shape[0]
    t = x_ref.shape[0]
    col = jax.lax.broadcasted_iota(jnp.int32, (tm, t), 1)
    w = jnp.zeros((tm, t), jnp.float32)
    for k in range(9):
        w = w + jnp.where(col == idx_ref[k], BLUR_FILTER[k], 0.0)
    acc = jnp.dot(
        w,
        x_ref[...].astype(jnp.float32),
        preferred_element_type=jnp.float32,
        precision=jax.lax.Precision.HIGHEST,
    )
    o_ref[...] = (acc * inv_ref[...]).astype(o_ref.dtype)


@functools.partial(jax.jit, static_argnames=("pad_size", "tile_m", "fuse_gather"))
def smooth_upsample(x, face_neighborhood, face_is_pad, pad_size, pool_map,
                    tile_m=2048, fuse_gather=None):
    n_small, C = x.shape
    n_faces = pool_map.shape[0]
    itemsize = jnp.dtype(x.dtype).itemsize
    sub = _sublane_multiple(itemsize)
    budget, vmem_limit = _vmem_budget_and_limit()

    # --- glue: compose unpool + pad + neighborhood into one index per (tap, face) ---
    # PyTorch: padded_x[j] == x[pool_map[rank[j]]] for non-pad j, else 0.  Composing the
    # chain avoids materializing x_unpooled (N, C) and padded_x (pad_size, C) in HBM.
    not_pad = jnp.logical_not(face_is_pad)
    rank = jnp.cumsum(not_pad.astype(jnp.int32)) - 1                    # row among non-pad faces
    src_full = jnp.where(
        not_pad,
        pool_map[jnp.clip(rank, 0, n_faces - 1)].astype(jnp.int32),
        jnp.int32(n_small),                                             # OOB sentinel -> zero row
    )                                                                   # (pad_size,)
    src = jnp.transpose(src_full[face_neighborhood])                    # (9, N) int32

    # --- glue: correction factor -> reciprocal (stays an in-kernel (TM,1) multiply) ---
    w = jnp.array(BLUR_FILTER, dtype=jnp.float32)
    nbr_not_pad = not_pad[face_neighborhood].astype(jnp.float32)        # (N, 9)
    corr = jnp.sum(nbr_not_pad * w[None, :], axis=-1)                   # (N,)
    inv_corr = (1.0 / corr).astype(jnp.float32)

    compiler_params = pltpu.CompilerParams(
        dimension_semantics=("parallel",),        # v7x: shard grid steps over the 2 TCs
        vmem_limit_bytes=vmem_limit,
    )

    t_pad = _round_up(max(n_small, sub), sub)
    if fuse_gather is None:
        fuse_gather = (t_pad <= _FUSE_MAX_ROWS
                       and t_pad * C * itemsize <= _FUSE_MAX_TABLE_BYTES)

    if fuse_gather:
        # ---- fused-gather path: x stays VMEM-resident, gather in-kernel (one-hot MXU) ----
        tm = min(_round_up(512, sub), _round_up(max(n_faces, sub), sub))
        n_tiles = pl.cdiv(max(n_faces, 1), tm)
        tm = max(sub, _round_up(pl.cdiv(n_faces, n_tiles), sub))
        n_pad = _round_up(n_faces, tm)

        x_tab = x if t_pad == n_small else jnp.pad(x, ((0, t_pad - n_small), (0, 0)))
        idx = src
        inv_in = inv_corr
        if n_pad != n_faces:
            idx = jnp.pad(idx, ((0, 0), (0, n_pad - n_faces)), constant_values=n_small)
            inv_in = jnp.pad(inv_in, (0, n_pad - n_faces), constant_values=1.0)
        idx3 = idx[..., None]                                           # (9, n_pad, 1)
        inv_in = inv_in[:, None]                                        # (n_pad, 1)

        out = pl.pallas_call(
            _blur_fused_gather_kernel,
            out_shape=jax.ShapeDtypeStruct((n_pad, C), x.dtype),
            grid_spec=pltpu.PrefetchScalarGridSpec(
                num_scalar_prefetch=0,
                grid=(n_pad // tm,),
                in_specs=[
                    pl.BlockSpec((t_pad, C), lambda i: (0, 0)),         # resident table
                    pl.BlockSpec((9, tm, 1), lambda i: (0, i, 0)),
                    pl.BlockSpec((tm, 1), lambda i: (i, 0)),
                ],
                out_specs=pl.BlockSpec((tm, C), lambda i: (i, 0)),
            ),
            compiler_params=compiler_params,
        )(x_tab, idx3, inv_in)
        return out[:n_faces]

    # ---- general path: XLA row-gather straight from x, Pallas does the 9-tap blur ----
    tm = _choose_tile_m(tile_m, n_faces, C, itemsize, sub, budget)
    n_pad = _round_up(n_faces, tm)

    idx = src
    inv_in = inv_corr
    if n_pad != n_faces:
        idx = jnp.pad(idx, ((0, 0), (0, n_pad - n_faces)), constant_values=n_small)
        inv_in = jnp.pad(inv_in, (0, n_pad - n_faces), constant_values=1.0)
    # Sentinel index == n_small is out of bounds -> 'fill' yields a zero row, reproducing
    # padded_x's zero rows without ever materializing x_unpooled / padded_x.
    gathered = jnp.take(x, idx, axis=0, mode="fill", fill_value=0)      # (9, n_pad, C)
    inv_in = inv_in[:, None]                                            # (n_pad, 1)

    out = pl.pallas_call(
        _blur_kernel,
        out_shape=jax.ShapeDtypeStruct((n_pad, C), x.dtype),
        grid_spec=pltpu.PrefetchScalarGridSpec(
            num_scalar_prefetch=0,
            grid=(n_pad // tm,),
            in_specs=[
                pl.BlockSpec((9, tm, C), lambda i: (0, i, 0)),
                pl.BlockSpec((tm, 1), lambda i: (i, 0)),
            ],
            out_specs=pl.BlockSpec((tm, C), lambda i: (i, 0)),
        ),
        compiler_params=compiler_params,
    )(gathered, inv_in)
    return out[:n_faces]


def smooth_upsample_reference(x, face_neighborhood, face_is_pad, pad_size, pool_map):
    """Pure-JAX replica of the PyTorch forward for validation."""
    x_unpooled = x[pool_map, :]
    n_faces = x_unpooled.shape[0]
    not_pad = jnp.logical_not(face_is_pad)
    rank = jnp.cumsum(not_pad.astype(jnp.int32)) - 1
    padded_x = jnp.where(
        not_pad[:, None],
        x_unpooled[jnp.clip(rank, 0, n_faces - 1)],
        jnp.zeros((), x.dtype),
    )
    w = jnp.array(BLUR_FILTER, dtype=x.dtype)
    num = jnp.einsum("nkc,k->nc", padded_x[face_neighborhood], w)
    corr = jnp.sum(
        (1.0 - face_is_pad[face_neighborhood].astype(x.dtype)) * w[None, :],
        axis=-1,
        keepdims=True,
    )
    return num / corr


if __name__ == "__main__":
    key = jax.random.PRNGKey(0)
    k1, k2, k3 = jax.random.split(key, 3)

    n_small, channels = 16, 128
    upsample_factor = 4
    n_faces = n_small * upsample_factor          # 64
    num_extra_pad = 16
    pad_size = n_faces + num_extra_pad           # 80

    x = jax.random.normal(k1, (n_small, channels), dtype=jnp.float32)
    pool_map = jnp.repeat(jnp.arange(n_small, dtype=jnp.int32), upsample_factor)  # (64,)

    perm = jax.random.permutation(k2, pad_size)
    face_is_pad = jnp.zeros((pad_size,), dtype=jnp.bool_).at[perm[:num_extra_pad]].set(True)

    face_neighborhood = jax.random.randint(
        k3, (n_faces, 9), 0, pad_size, dtype=jnp.int32
    )

    ref = smooth_upsample_reference(x, face_neighborhood, face_is_pad, pad_size, pool_map)

    # Small-table regime -> fused-gather kernel (VMEM-resident x, in-kernel one-hot gather).
    out_fused = jax.block_until_ready(
        smooth_upsample(x, face_neighborhood, face_is_pad, pad_size, pool_map,
                        fuse_gather=True))
    # General large-table path (XLA gather feeding the tiled 9-tap blur kernel).
    out_tiled = jax.block_until_ready(
        smooth_upsample(x, face_neighborhood, face_is_pad, pad_size, pool_map,
                        fuse_gather=False))

    assert out_fused.shape == (n_faces, channels)
    assert out_tiled.shape == (n_faces, channels)
    # Tiled path is pure f32 VALU math -> tight tolerance.
    assert jnp.allclose(out_tiled, ref, atol=1e-5, rtol=1e-5), "tiled-blur path mismatch"
    # Fused path routes through the MXU; HIGHEST precision is requested, but keep a looser
    # bound in case the precision hint is not honored (weights are exact powers of two).
    assert jnp.allclose(out_fused, ref, atol=1e-3, rtol=1e-3), "fused-gather path mismatch"

    print("KERNEL_OK")
</pallas_src>

<mosaic_0001>
module attributes {stable_mosaic.version = 11 : i64} {
  func.func @_blur_fused_gather_kernel(%arg0: i32, %arg1: memref<16x128xf32, #tpu.memory_space<vmem>>, %arg2: memref<9x64x1xi32, #tpu.memory_space<vmem>>, %arg3: memref<64x1xf32, #tpu.memory_space<vmem>>, %arg4: memref<64x128xf32, #tpu.memory_space<vmem>>) attributes {dimension_semantics = [#tpu.dimension_semantics<parallel>], iteration_bounds = array<i64: 1>, scalar_prefetch = 0 : i64, scratch_operands = 0 : i64, tpu.core_type = #tpu.core_type<tc>, window_params = [{pipeline_mode = #tpu.pipeline_mode<synchronous>, transform_indices = @transform_0, window_bounds = array<i64: 16, 128>}, {transform_indices = @transform_1, window_bounds = array<i64: 9, 64, 1>}, {transform_indices = @transform_2, window_bounds = array<i64: 64, 1>}, {transform_indices = @transform_3, window_bounds = array<i64: 64, 128>}]} {
    %0 = tpu.iota {dimensions = array<i32: 1>} : vector<64x16xi32>
    %cst = arith.constant 0.000000e+00 : f32
    %1 = vector.broadcast %cst : f32 to vector<64x16xf32>
    %c0 = arith.constant 0 : index
    %c0_0 = arith.constant 0 : index
    %c0_1 = arith.constant 0 : index
    %2 = vector.load %arg2[%c0, %c0_0, %c0_1] : memref<9x64x1xi32, #tpu.memory_space<vmem>>, vector<1x64x1xi32>
    %3 = vector.shape_cast %2 : vector<1x64x1xi32> to vector<64x1xi32>
    %4 = vector.broadcast %3 : vector<64x1xi32> to vector<64x16xi32>
    %5 = arith.cmpi eq, %0, %4 : vector<64x16xi32>
    %cst_2 = arith.constant 2.500000e-01 : f32
    %cst_3 = arith.constant 0.000000e+00 : f32
    %6 = vector.broadcast %cst_2 : f32 to vector<64x16xf32>
    %7 = vector.broadcast %cst_3 : f32 to vector<64x16xf32>
    %8 = arith.select %5, %6, %7 : vector<64x16xi1>, vector<64x16xf32>
    %9 = arith.addf %1, %8 : vector<64x16xf32>
    %c1 = arith.constant 1 : index
    %c0_4 = arith.constant 0 : index
    %c0_5 = arith.constant 0 : index
    %10 = vector.load %arg2[%c1, %c0_4, %c0_5] : memref<9x64x1xi32, #tpu.memory_space<vmem>>, vector<1x64x1xi32>
    %11 = vector.shape_cast %10 : vector<1x64x1xi32> to vector<64x1xi32>
    %12 = vector.broadcast %11 : vector<64x1xi32> to vector<64x16xi32>
    %13 = arith.cmpi eq, %0, %12 : vector<64x16xi32>
    %cst_6 = arith.constant 1.250000e-01 : f32
    %cst_7 = arith.constant 0.000000e+00 : f32
    %14 = vector.broadcast %cst_6 : f32 to vector<64x16xf32>
    %15 = vector.broadcast %cst_7 : f32 to vector<64x16xf32>
    %16 = arith.select %13, %14, %15 : vector<64x16xi1>, vector<64x16xf32>
    %17 = arith.addf %9, %16 : vector<64x16xf32>
    %c2 = arith.constant 2 : index
    %c0_8 = arith.constant 0 : index
    %c0_9 = arith.constant 0 : index
    %18 = vector.load %arg2[%c2, %c0_8, %c0_9] : memref<9x64x1xi32, #tpu.memory_space<vmem>>, vector<1x64x1xi32>
    %19 = vector.shape_cast %18 : vector<1x64x1xi32> to vector<64x1xi32>
    %20 = vector.broadcast %19 : vector<64x1xi32> to vector<64x16xi32>
    %21 = arith.cmpi eq, %0, %20 : vector<64x16xi32>
    %cst_10 = arith.constant 6.250000e-02 : f32
    %cst_11 = arith.constant 0.000000e+00 : f32
    %22 = vector.broadcast %cst_10 : f32 to vector<64x16xf32>
    %23 = vector.broadcast %cst_11 : f32 to vector<64x16xf32>
    %24 = arith.select %21, %22, %23 : vector<64x16xi1>, vector<64x16xf32>
    %25 = arith.addf %17, %24 : vector<64x16xf32>
    %c3 = arith.constant 3 : index
    %c0_12 = arith.constant 0 : index
    %c0_13 = arith.constant 0 : index
    %26 = vector.load %arg2[%c3, %c0_12, %c0_13] : memref<9x64x1xi32, #tpu.memory_space<vmem>>, vector<1x64x1xi32>
    %27 = vector.shape_cast %26 : vector<1x64x1xi32> to vector<64x1xi32>
    %28 = vector.broadcast %27 : vector<64x1xi32> to vector<64x16xi32>
    %29 = arith.cmpi eq, %0, %28 : vector<64x16xi32>
    %cst_14 = arith.constant 1.250000e-01 : f32
    %cst_15 = arith.constant 0.000000e+00 : f32
    %30 = vector.broadcast %cst_14 : f32 to vector<64x16xf32>
    %31 = vector.broadcast %cst_15 : f32 to vector<64x16xf32>
    %32 = arith.select %29, %30, %31 : vector<64x16xi1>, vector<64x16xf32>
    %33 = arith.addf %25, %32 : vector<64x16xf32>
    %c4 = arith.constant 4 : index
    %c0_16 = arith.constant 0 : index
    %c0_17 = arith.constant 0 : index
    %34 = vector.load %arg2[%c4, %c0_16, %c0_17] : memref<9x64x1xi32, #tpu.memory_space<vmem>>, vector<1x64x1xi32>
    %35 = vector.shape_cast %34 : vector<1x64x1xi32> to vector<64x1xi32>
    %36 = vector.broadcast %35 : vector<64x1xi32> to vector<64x16xi32>
    %37 = arith.cmpi eq, %0, %36 : vector<64x16xi32>
    %cst_18 = arith.constant 6.250000e-02 : f32
    %cst_19 = arith.constant 0.000000e+00 : f32
    %38 = vector.broadcast %cst_18 : f32 to vector<64x16xf32>
    %39 = vector.broadcast %cst_19 : f32 to vector<64x16xf32>
    %40 = arith.select %37, %38, %39 : vector<64x16xi1>, vector<64x16xf32>
    %41 = arith.addf %33, %40 : vector<64x16xf32>
    %c5 = arith.constant 5 : index
    %c0_20 = arith.constant 0 : index
    %c0_21 = arith.constant 0 : index
    %42 = vector.load %arg2[%c5, %c0_20, %c0_21] : memref<9x64x1xi32, #tpu.memory_space<vmem>>, vector<1x64x1xi32>
    %43 = vector.shape_cast %42 : vector<1x64x1xi32> to vector<64x1xi32>
    %44 = vector.broadcast %43 : vector<64x1xi32> to vector<64x16xi32>
    %45 = arith.cmpi eq, %0, %44 : vector<64x16xi32>
    %cst_22 = arith.constant 1.250000e-01 : f32
    %cst_23 = arith.constant 0.000000e+00 : f32
    %46 = vector.broadcast %cst_22 : f32 to vector<64x16xf32>
    %47 = vector.broadcast %cst_23 : f32 to vector<64x16xf32>
    %48 = arith.select %45, %46, %47 : vector<64x16xi1>, vector<64x16xf32>
    %49 = arith.addf %41, %48 : vector<64x16xf32>
    %c6 = arith.constant 6 : index
    %c0_24 = arith.constant 0 : index
    %c0_25 = arith.constant 0 : index
    %50 = vector.load %arg2[%c6, %c0_24, %c0_25] : memref<9x64x1xi32, #tpu.memory_space<vmem>>, vector<1x64x1xi32>
    %51 = vector.shape_cast %50 : vector<1x64x1xi32> to vector<64x1xi32>
    %52 = vector.broadcast %51 : vector<64x1xi32> to vector<64x16xi32>
    %53 = arith.cmpi eq, %0, %52 : vector<64x16xi32>
    %cst_26 = arith.constant 6.250000e-02 : f32
    %cst_27 = arith.constant 0.000000e+00 : f32
    %54 = vector.broadcast %cst_26 : f32 to vector<64x16xf32>
    %55 = vector.broadcast %cst_27 : f32 to vector<64x16xf32>
    %56 = arith.select %53, %54, %55 : vector<64x16xi1>, vector<64x16xf32>
    %57 = arith.addf %49, %56 : vector<64x16xf32>
    %c7 = arith.constant 7 : index
    %c0_28 = arith.constant 0 : index
    %c0_29 = arith.constant 0 : index
    %58 = vector.load %arg2[%c7, %c0_28, %c0_29] : memref<9x64x1xi32, #tpu.memory_space<vmem>>, vector<1x64x1xi32>
    %59 = vector.shape_cast %58 : vector<1x64x1xi32> to vector<64x1xi32>
    %60 = vector.broadcast %59 : vector<64x1xi32> to vector<64x16xi32>
    %61 = arith.cmpi eq, %0, %60 : vector<64x16xi32>
    %cst_30 = arith.constant 1.250000e-01 : f32
    %cst_31 = arith.constant 0.000000e+00 : f32
    %62 = vector.broadcast %cst_30 : f32 to vector<64x16xf32>
    %63 = vector.broadcast %cst_31 : f32 to vector<64x16xf32>
    %64 = arith.select %61, %62, %63 : vector<64x16xi1>, vector<64x16xf32>
    %65 = arith.addf %57, %64 : vector<64x16xf32>
    %c8 = arith.constant 8 : index
    %c0_32 = arith.constant 0 : index
    %c0_33 = arith.constant 0 : index
    %66 = vector.load %arg2[%c8, %c0_32, %c0_33] : memref<9x64x1xi32, #tpu.memory_space<vmem>>, vector<1x64x1xi32>
    %67 = vector.shape_cast %66 : vector<1x64x1xi32> to vector<64x1xi32>
    %68 = vector.broadcast %67 : vector<64x1xi32> to vector<64x16xi32>
    %69 = arith.cmpi eq, %0, %68 : vector<64x16xi32>
    %cst_34 = arith.constant 6.250000e-02 : f32
    %cst_35 = arith.constant 0.000000e+00 : f32
    %70 = vector.broadcast %cst_34 : f32 to vector<64x16xf32>
    %71 = vector.broadcast %cst_35 : f32 to vector<64x16xf32>
    %72 = arith.select %69, %70, %71 : vector<64x16xi1>, vector<64x16xf32>
    %73 = arith.addf %65, %72 : vector<64x16xf32>
    %c0_36 = arith.constant 0 : index
    %c0_37 = arith.constant 0 : index
    %74 = vector.load %arg1[%c0_36, %c0_37] : memref<16x128xf32, #tpu.memory_space<vmem>>, vector<16x128xf32>
    %cst_38 = arith.constant dense<0.000000e+00> : vector<64x128xf32>
    %75 = tpu.matmul %73, %74, %cst_38 {dimension_numbers = #tpu.dot_dimension_numbers<[1], [0], [0], [1], [0, 0, 1, 1], [], []>, precision = #tpu.contract_precision<fp32>} : vector<64x16xf32>, vector<16x128xf32>, vector<64x128xf32> -> vector<64x128xf32>
    %c0_39 = arith.constant 0 : index
    %c0_40 = arith.constant 0 : index
    %76 = vector.load %arg3[%c0_39, %c0_40] : memref<64x1xf32, #tpu.memory_space<vmem>>, vector<64x1xf32>
    %77 = vector.broadcast %76 : vector<64x1xf32> to vector<64x128xf32>
    %78 = arith.mulf %75, %77 : vector<64x128xf32>
    %c0_41 = arith.constant 0 : index
    %c0_42 = arith.constant 0 : index
    %79 = vector.load %arg4[%c0_41, %c0_42] : memref<64x128xf32, #tpu.memory_space<vmem>>, vector<64x128xf32>
    tpu.vector_store %arg4[%c0_41, %c0_42], %78 {strides = array<i32>} : memref<64x128xf32, #tpu.memory_space<vmem>>, vector<64x128xf32>,
    return
  }
  func.func @transform_0(%arg0: i32) -> (i32, i32) {
    %c0_i32 = arith.constant 0 : i32
    %c0_i32_0 = arith.constant 0 : i32
    %c0_i32_1 = arith.constant 0 : i32
    return %c0_i32, %c0_i32_0 : i32, i32
  }
  func.func @transform_1(%arg0: i32) -> (i32, i32, i32) {
    %c0_i32 = arith.constant 0 : i32
    %c0_i32_0 = arith.constant 0 : i32
    %c0_i32_1 = arith.constant 0 : i32
    return %c0_i32, %arg0, %c0_i32_0 : i32, i32, i32
  }
  func.func @transform_2(%arg0: i32) -> (i32, i32) {
    %c0_i32 = arith.constant 0 : i32
    %c0_i32_0 = arith.constant 0 : i32
    return %arg0, %c0_i32 : i32, i32
  }
  func.func @transform_3(%arg0: i32) -> (i32, i32) {
    %c0_i32 = arith.constant 0 : i32
    %c0_i32_0 = arith.constant 0 : i32
    return %arg0, %c0_i32 : i32, i32
  }
}

</mosaic_0001>

<llo_original>
// kernel: smooth_upsample.1
$region0: #{smooth_upsample.1}
  #allocation0 [shape = 'u32[]', space=smem, size = 0x4, offset = 0x4, fixed_abs, tag = 'smem constant byte address 0x4 - core index']
  #allocation1 [shape = 'u32[72,128]{1,0:T(1,128)}', space=vmem, size = 0x9000, scoped, tag = 'internal scratch']
  %s0 = inlined_call_operand.vmem [shape: f32[16,128], index: 0, kind: input, shape index: {}]
  %s1 = inlined_call_operand.vmem [shape: s32[9,64,1], index: 1, kind: input, shape index: {}]
  %s2 = inlined_call_operand.vmem [shape: f32[64,1], index: 2, kind: input, shape index: {}]
  %s3 = inlined_call_operand.hbm [shape: f32[64,128], index: 3, kind: output, shape index: {}]
  %s4 = sld [smem:[#allocation0]]
  $region22: #{smooth_upsample.1} parent=0
    _
  %s6 = ssub.s32 1, %s4
  %s7 = scalar_select 0, %s6, %s4
  $region1: #{smooth_upsample.1} parent=0
    #allocation2 [shape = 'u8[32768]{0}', space=vmem, size = 0x8000, scoped, tag = 'output window, operand 0, single buffered']
    #allocation3 [shape = 's32[1]{0}', space=sflag, size = 0x4, scoped, tag = 'scoped memory for smooth_upsample.1']
    %8 = vsyncpa [#allocation3], 0
    // Predicated region
    $region2: #{smooth_upsample.1} parent=1 // pred_check
      _
    $region3: #{smooth_upsample.1} parent=1 // pred_check_branch
      %10 = sbr.rel (0) target = $region5
    $region4: #{smooth_upsample.1} parent=1 // pred_region
      _
    $region5: #{smooth_upsample.1} parent=1 // pred_fallthru
      _
    // Predicated region
    $region6: #{smooth_upsample.1} parent=1 // pred_check
      _
    $region7: #{smooth_upsample.1} parent=1 // pred_check_branch
      %12 = sbr.rel (0) target = $region9
    $region8: #{smooth_upsample.1} parent=1 // pred_region
      _
    $region9: #{smooth_upsample.1} parent=1 // pred_fallthru
      _
    // Predicated region
    $region10: #{smooth_upsample.1} parent=1 // pred_check
      _
    $region11: #{smooth_upsample.1} parent=1 // pred_check_branch
      %14 = sbr.rel (0) target = $region13
    $region12: #{smooth_upsample.1} parent=1 // pred_region
      _
    $region13: #{smooth_upsample.1} parent=1 // pred_fallthru
      _
    %v15 = vlaneseq
    %v16 = vand.u32 %v15, 127
    %v17 = vld [vmem:[%s1] sm:$0xff]
    %v18 = vld [vmem:[%s1 + $0x8] sm:$0xff]
    %v19 = vld [vmem:[%s1 + $0x10] sm:$0xff]
    %v20 = vld [vmem:[%s1 + $0x18] sm:$0xff]
    %v21 = vld [vmem:[%s1 + $0x20] sm:$0xff]
    %v22 = vld [vmem:[%s1 + $0x28] sm:$0xff]
    %v23 = vld [vmem:[%s1 + $0x30] sm:$0xff]
    %v24 = vld [vmem:[%s1 + $0x38] sm:$0xff]
    %25 = vset.pattern.permute.xlu0 0
    %26 = vperm.xlu0 %25, %v17
    %v27 = vpop.permute.xlu0 %26
    %28 = vset.pattern.permute.xlu0 0
    %29 = vperm.xlu0 %28, %v18
    %v30 = vpop.permute.xlu0 %29
    %31 = vset.pattern.permute.xlu0 0
    %32 = vperm.xlu0 %31, %v19
    %v33 = vpop.permute.xlu0 %32
    %34 = vset.pattern.permute.xlu0 0
    %35 = vperm.xlu0 %34, %v20
    %v36 = vpop.permute.xlu0 %35
    %37 = vset.pattern.permute.xlu0 0
    %38 = vperm.xlu0 %37, %v21
    %v39 = vpop.permute.xlu0 %38
    %40 = vset.pattern.permute.xlu0 0
    %41 = vperm.xlu0 %40, %v22
    %v42 = vpop.permute.xlu0 %41
    %43 = vset.pattern.permute.xlu0 0
    %44 = vperm.xlu0 %43, %v23
    %v45 = vpop.permute.xlu0 %44
    %46 = vset.pattern.permute.xlu0 0
    %47 = vperm.xlu0 %46, %v24
    %v48 = vpop.permute.xlu0 %47
    %vm49 = vcmp.eq.s32.totalorder %v16, %v27
    %vm50 = vcmp.eq.s32.totalorder %v16, %v30
    %vm51 = vcmp.eq.s32.totalorder %v16, %v33
    %vm52 = vcmp.eq.s32.totalorder %v16, %v36
    %vm53 = vcmp.eq.s32.totalorder %v16, %v39
    %vm54 = vcmp.eq.s32.totalorder %v16, %v42
    %vm55 = vcmp.eq.s32.totalorder %v16, %v45
    %vm56 = vcmp.eq.s32.totalorder %v16, %v48
    %v57 = vsel %vm49, 0.25, 0.0
    %v58 = vsel %vm50, 0.25, 0.0
    %v59 = vsel %vm51, 0.25, 0.0
    %v60 = vsel %vm52, 0.25, 0.0
    %v61 = vsel %vm53, 0.25, 0.0
    %v62 = vsel %vm54, 0.25, 0.0
    %v63 = vsel %vm55, 0.25, 0.0
    %v64 = vsel %vm56, 0.25, 0.0
    %v65 = vadd.f32 %v57, 0.0
    %v66 = vadd.f32 %v58, 0.0
    %v67 = vadd.f32 %v59, 0.0
    %v68 = vadd.f32 %v60, 0.0
    %v69 = vadd.f32 %v61, 0.0
    %v70 = vadd.f32 %v62, 0.0
    %v71 = vadd.f32 %v63, 0.0
    %v72 = vadd.f32 %v64, 0.0
    %s73 = scalar_lea.vmem %s1, 64
    %v74 = vld [vmem:[%s73] sm:$0xff]
    %v75 = vld [vmem:[%s73 + $0x8] sm:$0xff]
    %v76 = vld [vmem:[%s73 + $0x10] sm:$0xff]
    %v77 = vld [vmem:[%s73 + $0x18] sm:$0xff]
    %v78 = vld [vmem:[%s73 + $0x20] sm:$0xff]
    %v79 = vld [vmem:[%s73 + $0x28] sm:$0xff]
    %v80 = vld [vmem:[%s73 + $0x30] sm:$0xff]
    %v81 = vld [vmem:[%s73 + $0x38] sm:$0xff]
    %82 = vset.pattern.permute.xlu0 0
    %83 = vperm.xlu0 %82, %v74
    %v84 = vpop.permute.xlu0 %83
    %85 = vset.pattern.permute.xlu0 0
    %86 = vperm.xlu0 %85, %v75
    %v87 = vpop.permute.xlu0 %86
    %88 = vset.pattern.permute.xlu0 0
    %89 = vperm.xlu0 %88, %v76
    %v90 = vpop.permute.xlu0 %89
    %91 = vset.pattern.permute.xlu0 0
    %92 = vperm.xlu0 %91, %v77
    %v93 = vpop.permute.xlu0 %92
    %94 = vset.pattern.permute.xlu0 0
    %95 = vperm.xlu0 %94, %v78
    %v96 = vpop.permute.xlu0 %95
    %97 = vset.pattern.permute.xlu0 0
    %98 = vperm.xlu0 %97, %v79
    %v99 = vpop.permute.xlu0 %98
    %100 = vset.pattern.permute.xlu0 0
    %101 = vperm.xlu0 %100, %v80
    %v102 = vpop.permute.xlu0 %101
    %103 = vset.pattern.permute.xlu0 0
    %104 = vperm.xlu0 %103, %v81
    %v105 = vpop.permute.xlu0 %104
    %vm106 = vcmp.eq.s32.totalorder %v16, %v84
    %vm107 = vcmp.eq.s32.totalorder %v16, %v87
    %vm108 = vcmp.eq.s32.totalorder %v16, %v90
    %vm109 = vcmp.eq.s32.totalorder %v16, %v93
    %vm110 = vcmp.eq.s32.totalorder %v16, %v96
    %vm111 = vcmp.eq.s32.totalorder %v16, %v99
    %vm112 = vcmp.eq.s32.totalorder %v16, %v102
    %vm113 = vcmp.eq.s32.totalorder %v16, %v105
    %v114 = vsel %vm106, 0.125, 0.0
    %v115 = vsel %vm107, 0.125, 0.0
    %v116 = vsel %vm108, 0.125, 0.0
    %v117 = vsel %vm109, 0.125, 0.0
    %v118 = vsel %vm110, 0.125, 0.0
    %v119 = vsel %vm111, 0.125, 0.0
    %v120 = vsel %vm112, 0.125, 0.0
    %v121 = vsel %vm113, 0.125, 0.0
    %v122 = vadd.f32 %v65, %v114
    %v123 = vadd.f32 %v66, %v115
    %v124 = vadd.f32 %v67, %v116
    %v125 = vadd.f32 %v68, %v117
    %v126 = vadd.f32 %v69, %v118
    %v127 = vadd.f32 %v70, %v119
    %v128 = vadd.f32 %v71, %v120
    %v129 = vadd.f32 %v72, %v121
    %s130 = scalar_lea.vmem %s1, 128
    %v131 = vld [vmem:[%s130] sm:$0xff]
    %v132 = vld [vmem:[%s130 + $0x8] sm:$0xff]
    %v133 = vld [vmem:[%s130 + $0x10] sm:$0xff]
    %v134 = vld [vmem:[%s130 + $0x18] sm:$0xff]
    %v135 = vld [vmem:[%s130 + $0x20] sm:$0xff]
    %v136 = vld [vmem:[%s130 + $0x28] sm:$0xff]
    %v137 = vld [vmem:[%s130 + $0x30] sm:$0xff]
    %v138 = vld [vmem:[%s130 + $0x38] sm:$0xff]
    %139 = vset.pattern.permute.xlu0 0
    %140 = vperm.xlu0 %139, %v131
    %v141 = vpop.permute.xlu0 %140
    %142 = vset.pattern.permute.xlu0 0
    %143 = vperm.xlu0 %142, %v132
    %v144 = vpop.permute.xlu0 %143
    %145 = vset.pattern.permute.xlu0 0
    %146 = vperm.xlu0 %145, %v133
    %v147 = vpop.permute.xlu0 %146
    %148 = vset.pattern.permute.xlu0 0
    %149 = vperm.xlu0 %148, %v134
    %v150 = vpop.permute.xlu0 %149
    %151 = vset.pattern.permute.xlu0 0
    %152 = vperm.xlu0 %151, %v135
    %v153 = vpop.permute.xlu0 %152
    %154 = vset.pattern.permute.xlu0 0
    %155 = vperm.xlu0 %154, %v136
    %v156 = vpop.permute.xlu0 %155
    %157 = vset.pattern.permute.xlu0 0
    %158 = vperm.xlu0 %157, %v137
    %v159 = vpop.permute.xlu0 %158
    %160 = vset.pattern.permute.xlu0 0
    %161 = vperm.xlu0 %160, %v138
    %v162 = vpop.permute.xlu0 %161
    %vm163 = vcmp.eq.s32.totalorder %v16, %v141
    %vm164 = vcmp.eq.s32.totalorder %v16, %v144
    %vm165 = vcmp.eq.s32.totalorder %v16, %v147
    %vm166 = vcmp.eq.s32.totalorder %v16, %v150
    %vm167 = vcmp.eq.s32.totalorder %v16, %v153
    %vm168 = vcmp.eq.s32.totalorder %v16, %v156
    %vm169 = vcmp.eq.s32.totalorder %v16, %v159
    %vm170 = vcmp.eq.s32.totalorder %v16, %v162
    %v171 = vsel %vm163, 0.0625, 0.0
    %v172 = vsel %vm164, 0.0625, 0.0
    %v173 = vsel %vm165, 0.0625, 0.0
    %v174 = vsel %vm166, 0.0625, 0.0
    %v175 = vsel %vm167, 0.0625, 0.0
    %v176 = vsel %vm168, 0.0625, 0.0
    %v177 = vsel %vm169, 0.0625, 0.0
    %v178 = vsel %vm170, 0.0625, 0.0
    %v179 = vadd.f32 %v122, %v171
    %v180 = vadd.f32 %v123, %v172
    %v181 = vadd.f32 %v124, %v173
    %v182 = vadd.f32 %v125, %v174
    %v183 = vadd.f32 %v126, %v175
    %v184 = vadd.f32 %v127, %v176
    %v185 = vadd.f32 %v128, %v177
    %v186 = vadd.f32 %v129, %v178
    %s187 = scalar_lea.vmem %s1, 192
    %v188 = vld [vmem:[%s187] sm:$0xff]
    %v189 = vld [vmem:[%s187 + $0x8] sm:$0xff]
    %v190 = vld [vmem:[%s187 + $0x10] sm:$0xff]
    %v191 = vld [vmem:[%s187 + $0x18] sm:$0xff]
    %v192 = vld [vmem:[%s187 + $0x20] sm:$0xff]
    %v193 = vld [vmem:[%s187 + $0x28] sm:$0xff]
    %v194 = vld [vmem:[%s187 + $0x30] sm:$0xff]
    %v195 = vld [vmem:[%s187 + $0x38] sm:$0xff]
    %196 = vset.pattern.permute.xlu0 0
    %197 = vperm.xlu0 %196, %v188
    %v198 = vpop.permute.xlu0 %197
    %199 = vset.pattern.permute.xlu0 0
    %200 = vperm.xlu0 %199, %v189
    %v201 = vpop.permute.xlu0 %200
    %202 = vset.pattern.permute.xlu0 0
    %203 = vperm.xlu0 %202, %v190
    %v204 = vpop.permute.xlu0 %203
    %205 = vset.pattern.permute.xlu0 0
    %206 = vperm.xlu0 %205, %v191
    %v207 = vpop.permute.xlu0 %206
    %208 = vset.pattern.permute.xlu0 0
    %209 = vperm.xlu0 %208, %v192
    %v210 = vpop.permute.xlu0 %209
    %211 = vset.pattern.permute.xlu0 0
    %212 = vperm.xlu0 %211, %v193
    %v213 = vpop.permute.xlu0 %212
    %214 = vset.pattern.permute.xlu0 0
    %215 = vperm.xlu0 %214, %v194
    %v216 = vpop.permute.xlu0 %215
    %217 = vset.pattern.permute.xlu0 0
    %218 = vperm.xlu0 %217, %v195
    %v219 = vpop.permute.xlu0 %218
    %vm220 = vcmp.eq.s32.totalorder %v16, %v198
    %vm221 = vcmp.eq.s32.totalorder %v16, %v201
    %vm222 = vcmp.eq.s32.totalorder %v16, %v204
    %vm223 = vcmp.eq.s32.totalorder %v16, %v207
    %vm224 = vcmp.eq.s32.totalorder %v16, %v210
    %vm225 = vcmp.eq.s32.totalorder %v16, %v213
    %vm226 = vcmp.eq.s32.totalorder %v16, %v216
    %vm227 = vcmp.eq.s32.totalorder %v16, %v219
    %v228 = vsel %vm220, 0.125, 0.0
    %v229 = vsel %vm221, 0.125, 0.0
    %v230 = vsel %vm222, 0.125, 0.0
    %v231 = vsel %vm223, 0.125, 0.0
    %v232 = vsel %vm224, 0.125, 0.0
    %v233 = vsel %vm225, 0.125, 0.0
    %v234 = vsel %vm226, 0.125, 0.0
    %v235 = vsel %vm227, 0.125, 0.0
    %v236 = vadd.f32 %v179, %v228
    %v237 = vadd.f32 %v180, %v229
    %v238 = vadd.f32 %v181, %v230
    %v239 = vadd.f32 %v182, %v231
    %v240 = vadd.f32 %v183, %v232
    %v241 = vadd.f32 %v184, %v233
    %v242 = vadd.f32 %v185, %v234
    %v243 = vadd.f32 %v186, %v235
    %s244 = scalar_lea.vmem %s1, 256
    %v245 = vld [vmem:[%s244] sm:$0xff]
    %v246 = vld [vmem:[%s244 + $0x8] sm:$0xff]
    %v247 = vld [vmem:[%s244 + $0x10] sm:$0xff]
    %v248 = vld [vmem:[%s244 + $0x18] sm:$0xff]
    %v249 = vld [vmem:[%s244 + $0x20] sm:$0xff]
    %v250 = vld [vmem:[%s244 + $0x28] sm:$0xff]
    %v251 = vld [vmem:[%s244 + $0x30] sm:$0xff]
    %v252 = vld [vmem:[%s244 + $0x38] sm:$0xff]
    %253 = vset.pattern.permute.xlu0 0
    %254 = vperm.xlu0 %253, %v245
    %v255 = vpop.permute.xlu0 %254
    %256 = vset.pattern.permute.xlu0 0
    %257 = vperm.xlu0 %256, %v246
    %v258 = vpop.permute.xlu0 %257
    %259 = vset.pattern.permute.xlu0 0
    %260 = vperm.xlu0 %259, %v247
    %v261 = vpop.permute.xlu0 %260
    %262 = vset.pattern.permute.xlu0 0
    %263 = vperm.xlu0 %262, %v248
    %v264 = vpop.permute.xlu0 %263
    %265 = vset.pattern.permute.xlu0 0
    %266 = vperm.xlu0 %265, %v249
    %v267 = vpop.permute.xlu0 %266
    %268 = vset.pattern.permute.xlu0 0
    %269 = vperm.xlu0 %268, %v250
    %v270 = vpop.permute.xlu0 %269
    %271 = vset.pattern.permute.xlu0 0
    %272 = vperm.xlu0 %271, %v251
    %v273 = vpop.permute.xlu0 %272
    %274 = vset.pattern.permute.xlu0 0
    %275 = vperm.xlu0 %274, %v252
    %v276 = vpop.permute.xlu0 %275
    %vm277 = vcmp.eq.s32.totalorder %v16, %v255
    %vm278 = vcmp.eq.s32.totalorder %v16, %v258
    %vm279 = vcmp.eq.s32.totalorder %v16, %v261
    %vm280 = vcmp.eq.s32.totalorder %v16, %v264
    %vm281 = vcmp.eq.s32.totalorder %v16, %v267
    %vm282 = vcmp.eq.s32.totalorder %v16, %v270
    %vm283 = vcmp.eq.s32.totalorder %v16, %v273
    %vm284 = vcmp.eq.s32.totalorder %v16, %v276
    %v285 = vsel %vm277, 0.0625, 0.0
    %v286 = vsel %vm278, 0.0625, 0.0
    %v287 = vsel %vm279, 0.0625, 0.0
    %v288 = vsel %vm280, 0.0625, 0.0
    %v289 = vsel %vm281, 0.0625, 0.0
    %v290 = vsel %vm282, 0.0625, 0.0
    %v291 = vsel %vm283, 0.0625, 0.0
    %v292 = vsel %vm284, 0.0625, 0.0
    %v293 = vadd.f32 %v236, %v285
    %v294 = vadd.f32 %v237, %v286
    %v295 = vadd.f32 %v238, %v287
    %v296 = vadd.f32 %v239, %v288
    %v297 = vadd.f32 %v240, %v289
    %v298 = vadd.f32 %v241, %v290
    %v299 = vadd.f32 %v242, %v291
    %v300 = vadd.f32 %v243, %v292
    %s301 = scalar_lea.vmem %s1, 320
    %v302 = vld [vmem:[%s301] sm:$0xff]
    %v303 = vld [vmem:[%s301 + $0x8] sm:$0xff]
    %v304 = vld [vmem:[%s301 + $0x10] sm:$0xff]
    %v305 = vld [vmem:[%s301 + $0x18] sm:$0xff]
    %v306 = vld [vmem:[%s301 + $0x20] sm:$0xff]
    %v307 = vld [vmem:[%s301 + $0x28] sm:$0xff]
    %v308 = vld [vmem:[%s301 + $0x30] sm:$0xff]
    %v309 = vld [vmem:[%s301 + $0x38] sm:$0xff]
    %310 = vset.pattern.permute.xlu0 0
    %311 = vperm.xlu0 %310, %v302
    %v312 = vpop.permute.xlu0 %311
    %313 = vset.pattern.permute.xlu0 0
    %314 = vperm.xlu0 %313, %v303
    %v315 = vpop.permute.xlu0 %314
    %316 = vset.pattern.permute.xlu0 0
    %317 = vperm.xlu0 %316, %v304
    %v318 = vpop.permute.xlu0 %317
    %319 = vset.pattern.permute.xlu0 0
    %320 = vperm.xlu0 %319, %v305
    %v321 = vpop.permute.xlu0 %320
    %322 = vset.pattern.permute.xlu0 0
    %323 = vperm.xlu0 %322, %v306
    %v324 = vpop.permute.xlu0 %323
    %325 = vset.pattern.permute.xlu0 0
    %326 = vperm.xlu0 %325, %v307
    %v327 = vpop.permute.xlu0 %326
    %328 = vset.pattern.permute.xlu0 0
    %329 = vperm.xlu0 %328, %v308
    %v330 = vpop.permute.xlu0 %329
    %331 = vset.pattern.permute.xlu0 0
    %332 = vperm.xlu0 %331, %v309
    %v333 = vpop.permute.xlu0 %332
    %vm334 = vcmp.eq.s32.totalorder %v16, %v312
    %vm335 = vcmp.eq.s32.totalorder %v16, %v315
    %vm336 = vcmp.eq.s32.totalorder %v16, %v318
    %vm337 = vcmp.eq.s32.totalorder %v16, %v321
    %vm338 = vcmp.eq.s32.totalorder %v16, %v324
    %vm339 = vcmp.eq.s32.totalorder %v16, %v327
    %vm340 = vcmp.eq.s32.totalorder %v16, %v330
    %vm341 = vcmp.eq.s32.totalorder %v16, %v333
    %v342 = vsel %vm334, 0.125, 0.0
    %v343 = vsel %vm335, 0.125, 0.0
    %v344 = vsel %vm336, 0.125, 0.0
    %v345 = vsel %vm337, 0.125, 0.0
    %v346 = vsel %vm338, 0.125, 0.0
    %v347 = vsel %vm339, 0.125, 0.0
    %v348 = vsel %vm340, 0.125, 0.0
    %v349 = vsel %vm341, 0.125, 0.0
    %v350 = vadd.f32 %v293, %v342
    %v351 = vadd.f32 %v294, %v343
    %v352 = vadd.f32 %v295, %v344
    %v353 = vadd.f32 %v296, %v345
    %v354 = vadd.f32 %v297, %v346
    %v355 = vadd.f32 %v298, %v347
    %v356 = vadd.f32 %v299, %v348
    %v357 = vadd.f32 %v300, %v349
    %s358 = scalar_lea.vmem %s1, 384
    %v359 = vld [vmem:[%s358] sm:$0xff]
    %v360 = vld [vmem:[%s358 + $0x8] sm:$0xff]
    %v361 = vld [vmem:[%s358 + $0x10] sm:$0xff]
    %v362 = vld [vmem:[%s358 + $0x18] sm:$0xff]
    %v363 = vld [vmem:[%s358 + $0x20] sm:$0xff]
    %v364 = vld [vmem:[%s358 + $0x28] sm:$0xff]
    %v365 = vld [vmem:[%s358 + $0x30] sm:$0xff]
    %v366 = vld [vmem:[%s358 + $0x38] sm:$0xff]
    %367 = vset.pattern.permute.xlu0 0
    %368 = vperm.xlu0 %367, %v359
    %v369 = vpop.permute.xlu0 %368
    %370 = vset.pattern.permute.xlu0 0
    %371 = vperm.xlu0 %370, %v360
    %v372 = vpop.permute.xlu0 %371
    %373 = vset.pattern.permute.xlu0 0
    %374 = vperm.xlu0 %373, %v361
    %v375 = vpop.permute.xlu0 %374
    %376 = vset.pattern.permute.xlu0 0
    %377 = vperm.xlu0 %376, %v362
    %v378 = vpop.permute.xlu0 %377
    %379 = vset.pattern.permute.xlu0 0
    %380 = vperm.xlu0 %379, %v363
    %v381 = vpop.permute.xlu0 %380
    %382 = vset.pattern.permute.xlu0 0
    %383 = vperm.xlu0 %382, %v364
    %v384 = vpop.permute.xlu0 %383
    %385 = vset.pattern.permute.xlu0 0
    %386 = vperm.xlu0 %385, %v365
    %v387 = vpop.permute.xlu0 %386
    %388 = vset.pattern.permute.xlu0 0
    %389 = vperm.xlu0 %388, %v366
    %v390 = vpop.permute.xlu0 %389
    %vm391 = vcmp.eq.s32.totalorder %v16, %v369
    %vm392 = vcmp.eq.s32.totalorder %v16, %v372
    %vm393 = vcmp.eq.s32.totalorder %v16, %v375
    %vm394 = vcmp.eq.s32.totalorder %v16, %v378
    %vm395 = vcmp.eq.s32.totalorder %v16, %v381
    %vm396 = vcmp.eq.s32.totalorder %v16, %v384
    %vm397 = vcmp.eq.s32.totalorder %v16, %v387
    %vm398 = vcmp.eq.s32.totalorder %v16, %v390
    %v399 = vsel %vm391, 0.0625, 0.0
    %v400 = vsel %vm392, 0.0625, 0.0
    %v401 = vsel %vm393, 0.0625, 0.0
    %v402 = vsel %vm394, 0.0625, 0.0
    %v403 = vsel %vm395, 0.0625, 0.0
    %v404 = vsel %vm396, 0.0625, 0.0
    %v405 = vsel %vm397, 0.0625, 0.0
    %v406 = vsel %vm398, 0.0625, 0.0
    %v407 = vadd.f32 %v350, %v399
    %v408 = vadd.f32 %v351, %v400
    %v409 = vadd.f32 %v352, %v401
    %v410 = vadd.f32 %v353, %v402
    %v411 = vadd.f32 %v354, %v403
    %v412 = vadd.f32 %v355, %v404
    %v413 = vadd.f32 %v356, %v405
    %v414 = vadd.f32 %v357, %v406
    %s415 = scalar_lea.vmem %s1, 448
    %v416 = vld [vmem:[%s415] sm:$0xff]
    %v417 = vld [vmem:[%s415 + $0x8] sm:$0xff]
    %v418 = vld [vmem:[%s415 + $0x10] sm:$0xff]
    %v419 = vld [vmem:[%s415 + $0x18] sm:$0xff]
    %v420 = vld [vmem:[%s415 + $0x20] sm:$0xff]
    %v421 = vld [vmem:[%s415 + $0x28] sm:$0xff]
    %v422 = vld [vmem:[%s415 + $0x30] sm:$0xff]
    %v423 = vld [vmem:[%s415 + $0x38] sm:$0xff]
    %424 = vset.pattern.permute.xlu0 0
    %425 = vperm.xlu0 %424, %v416
    %v426 = vpop.permute.xlu0 %425
    %427 = vset.pattern.permute.xlu0 0
    %428 = vperm.xlu0 %427, %v417
    %v429 = vpop.permute.xlu0 %428
    %430 = vset.pattern.permute.xlu0 0
    %431 = vperm.xlu0 %430, %v418
    %v432 = vpop.permute.xlu0 %431
    %433 = vset.pattern.permute.xlu0 0
    %434 = vperm.xlu0 %433, %v419
    %v435 = vpop.permute.xlu0 %434
    %436 = vset.pattern.permute.xlu0 0
    %437 = vperm.xlu0 %436, %v420
    %v438 = vpop.permute.xlu0 %437
    %439 = vset.pattern.permute.xlu0 0
    %440 = vperm.xlu0 %439, %v421
    %v441 = vpop.permute.xlu0 %440
    %442 = vset.pattern.permute.xlu0 0
    %443 = vperm.xlu0 %442, %v422
    %v444 = vpop.permute.xlu0 %443
    %445 = vset.pattern.permute.xlu0 0
    %446 = vperm.xlu0 %445, %v423
    %v447 = vpop.permute.xlu0 %446
    %vm448 = vcmp.eq.s32.totalorder %v16, %v426
    %vm449 = vcmp.eq.s32.totalorder %v16, %v429
    %vm450 = vcmp.eq.s32.totalorder %v16, %v432
    %vm451 = vcmp.eq.s32.totalorder %v16, %v435
    %vm452 = vcmp.eq.s32.totalorder %v16, %v438
    %vm453 = vcmp.eq.s32.totalorder %v16, %v441
    %vm454 = vcmp.eq.s32.totalorder %v16, %v444
    %vm455 = vcmp.eq.s32.totalorder %v16, %v447
    %v456 = vsel %vm448, 0.125, 0.0
    %v457 = vsel %vm449, 0.125, 0.0
    %v458 = vsel %vm450, 0.125, 0.0
    %v459 = vsel %vm451, 0.125, 0.0
    %v460 = vsel %vm452, 0.125, 0.0
    %v461 = vsel %vm453, 0.125, 0.0
    %v462 = vsel %vm454, 0.125, 0.0
    %v463 = vsel %vm455, 0.125, 0.0
    %v464 = vadd.f32 %v407, %v456
    %v465 = vadd.f32 %v408, %v457
    %v466 = vadd.f32 %v409, %v458
    %v467 = vadd.f32 %v410, %v459
    %v468 = vadd.f32 %v411, %v460
    %v469 = vadd.f32 %v412, %v461
    %v470 = vadd.f32 %v413, %v462
    %v471 = vadd.f32 %v414, %v463
    %s472 = scalar_lea.vmem %s1, 512
    %v473 = vld [vmem:[%s472] sm:$0xff]
    %v474 = vld [vmem:[%s472 + $0x8] sm:$0xff]
    %v475 = vld [vmem:[%s472 + $0x10] sm:$0xff]
    %v476 = vld [vmem:[%s472 + $0x18] sm:$0xff]
    %v477 = vld [vmem:[%s472 + $0x20] sm:$0xff]
    %v478 = vld [vmem:[%s472 + $0x28] sm:$0xff]
    %v479 = vld [vmem:[%s472 + $0x30] sm:$0xff]
    %v480 = vld [vmem:[%s472 + $0x38] sm:$0xff]
    %481 = vset.pattern.permute.xlu0 0
    %482 = vperm.xlu0 %481, %v473
    %v483 = vpop.permute.xlu0 %482
    %484 = vset.pattern.permute.xlu0 0
    %485 = vperm.xlu0 %484, %v474
    %v486 = vpop.permute.xlu0 %485
    %487 = vset.pattern.permute.xlu0 0
    %488 = vperm.xlu0 %487, %v475
    %v489 = vpop.permute.xlu0 %488
    %490 = vset.pattern.permute.xlu0 0
    %491 = vperm.xlu0 %490, %v476
    %v492 = vpop.permute.xlu0 %491
    %493 = vset.pattern.permute.xlu0 0
    %494 = vperm.xlu0 %493, %v477
    %v495 = vpop.permute.xlu0 %494
    %496 = vset.pattern.permute.xlu0 0
    %497 = vperm.xlu0 %496, %v478
    %v498 = vpop.permute.xlu0 %497
    %499 = vset.pattern.permute.xlu0 0
    %500 = vperm.xlu0 %499, %v479
    %v501 = vpop.permute.xlu0 %500
    %502 = vset.pattern.permute.xlu0 0
    %503 = vperm.xlu0 %502, %v480
    %v504 = vpop.permute.xlu0 %503
    %vm505 = vcmp.eq.s32.totalorder %v16, %v483
    %vm506 = vcmp.eq.s32.totalorder %v16, %v486
    %vm507 = vcmp.eq.s32.totalorder %v16, %v489
    %vm508 = vcmp.eq.s32.totalorder %v16, %v492
    %vm509 = vcmp.eq.s32.totalorder %v16, %v495
    %vm510 = vcmp.eq.s32.totalorder %v16, %v498
    %vm511 = vcmp.eq.s32.totalorder %v16, %v501
    %vm512 = vcmp.eq.s32.totalorder %v16, %v504
    %v513 = vsel %vm505, 0.0625, 0.0
    %v514 = vsel %vm506, 0.0625, 0.0
    %v515 = vsel %vm507, 0.0625, 0.0
    %v516 = vsel %vm508, 0.0625, 0.0
    %v517 = vsel %vm509, 0.0625, 0.0
    %v518 = vsel %vm510, 0.0625, 0.0
    %v519 = vsel %vm511, 0.0625, 0.0
    %v520 = vsel %vm512, 0.0625, 0.0
    %v521 = vadd.f32 %v464, %v513
    %v522 = vadd.f32 %v465, %v514
    %v523 = vadd.f32 %v466, %v515
    %v524 = vadd.f32 %v467, %v516
    %v525 = vadd.f32 %v468, %v517
    %v526 = vadd.f32 %v469, %v518
    %v527 = vadd.f32 %v470, %v519
    %v528 = vadd.f32 %v471, %v520
    %v529 = vld [vmem:[%s0] sm:$0xff]
    %v530 = vld [vmem:[%s0 + $0x8] sm:$0xff]
    %vm531 = vcmask 130048
    %v533 = vsel %vm531, %v521, 0
    %v536 = vsel %vm531, %v522, 0
    %v539 = vsel %vm531, %v523, 0
    %v542 = vsel %vm531, %v524, 0
    %v545 = vsel %vm531, %v525, 0
    %v548 = vsel %vm531, %v526, 0
    %v551 = vsel %vm531, %v527, 0
    %v554 = vsel %vm531, %v528, 0
    %556 = vmatpush.msra.mxu0 0.0
    %557 = vmatpush.msra.mxu0 0.0
    %558 = vmatpush.msra.mxu0 0.0
    %559 = vmatpush.msra.mxu0 0.0
    %560 = vmatpush.msra.mxu0 0.0
    %561 = vmatpush.msra.mxu0 0.0
    %562 = vmatpush.msra.mxu0 0.0
    %563 = vmatpush.msra.mxu0 0.0
    %564 = vmatpush.msra.mxu0 0.0
    %565 = vmatpush.msra.mxu0 0.0
    %566 = vmatpush.msra.mxu0 0.0
    %567 = vmatpush.msra.mxu0 0.0
    %568 = vmatpush.msra.mxu0 0.0
    %569 = vmatpush.msra.mxu0 0.0
    %v570 = vand.u32 %v530, 4294901760
    %571 = vmatpush.msra.mxu0 %v570
    %v572 = vand.u32 %v529, 4294901760
    %573 = vmatpush.msra.mxu0 %v572
    %v574 = vand.u32 %v533, 4294901760
    %v575 = vsub.f32 %v533, %v574
    %v576 = vand.u32 %v575, 4294901760
    %v577 = vsub.f32 %v575, %v576
    %v578 = vand.u32 %v577, 4294901760
    %579 = vmatmul.f32.gmra.mxu0 %v578
    %v580 = vpop.f32.mrf.mxu0
    %v581 = vadd.f32 0.0, %v580
    %v582 = vand.u32 %v536, 4294901760
    %v583 = vsub.f32 %v536, %v582
    %v584 = vand.u32 %v583, 4294901760
    %v585 = vsub.f32 %v583, %v584
    %v586 = vand.u32 %v585, 4294901760
    %587 = vmatmul.f32.gmra.mxu0 %v586
    %v588 = vpop.f32.mrf.mxu0
    %v589 = vadd.f32 0.0, %v588
    %v590 = vand.u32 %v539, 4294901760
    %v591 = vsub.f32 %v539, %v590
    %v592 = vand.u32 %v591, 4294901760
    %v593 = vsub.f32 %v591, %v592
    %v594 = vand.u32 %v593, 4294901760
    %595 = vmatmul.f32.gmra.mxu0 %v594
    %v596 = vpop.f32.mrf.mxu0
    %v597 = vadd.f32 0.0, %v596
    %v598 = vand.u32 %v542, 4294901760
    %v599 = vsub.f32 %v542, %v598
    %v600 = vand.u32 %v599, 4294901760
    %v601 = vsub.f32 %v599, %v600
    %v602 = vand.u32 %v601, 4294901760
    %603 = vmatmul.f32.gmra.mxu0 %v602
    %v604 = vpop.f32.mrf.mxu0
    %v605 = vadd.f32 0.0, %v604
    %v606 = vand.u32 %v545, 4294901760
    %v607 = vsub.f32 %v545, %v606
    %v608 = vand.u32 %v607, 4294901760
    %v609 = vsub.f32 %v607, %v608
    %v610 = vand.u32 %v609, 4294901760
    %611 = vmatmul.f32.gmra.mxu0 %v610
    %v612 = vpop.f32.mrf.mxu0
    %v613 = vadd.f32 0.0, %v612
    %v614 = vand.u32 %v548, 4294901760
    %v615 = vsub.f32 %v548, %v614
    %v616 = vand.u32 %v615, 4294901760
    %v617 = vsub.f32 %v615, %v616
    %v618 = vand.u32 %v617, 4294901760
    %619 = vmatmul.f32.gmra.mxu0 %v618
    %v620 = vpop.f32.mrf.mxu0
    %v621 = vadd.f32 0.0, %v620
    %v622 = vand.u32 %v551, 4294901760
    %v623 = vsub.f32 %v551, %v622
    %v624 = vand.u32 %v623, 4294901760
    %v625 = vsub.f32 %v623, %v624
    %v626 = vand.u32 %v625, 4294901760
    %627 = vmatmul.f32.gmra.mxu0 %v626
    %v628 = vpop.f32.mrf.mxu0
    %v629 = vadd.f32 0.0, %v628
    %v630 = vand.u32 %v554, 4294901760
    %v631 = vsub.f32 %v554, %v630
    %v632 = vand.u32 %v631, 4294901760
    %v633 = vsub.f32 %v631, %v632
    %v634 = vand.u32 %v633, 4294901760
    %635 = vmatmul.f32.gmra.mxu0 %v634
    %v636 = vpop.f32.mrf.mxu0
    %v637 = vadd.f32 0.0, %v636
    %638 = vdwg.mxu0
    %639 = vmatpush.msra.mxu0 0.0
    %640 = vmatpush.msra.mxu0 0.0
    %641 = vmatpush.msra.mxu0 0.0
    %642 = vmatpush.msra.mxu0 0.0
    %643 = vmatpush.msra.mxu0 0.0
    %644 = vmatpush.msra.mxu0 0.0
    %645 = vmatpush.msra.mxu0 0.0
    %646 = vmatpush.msra.mxu0 0.0
    %647 = vmatpush.msra.mxu0 0.0
    %648 = vmatpush.msra.mxu0 0.0
    %649 = vmatpush.msra.mxu0 0.0
    %650 = vmatpush.msra.mxu0 0.0
    %651 = vmatpush.msra.mxu0 0.0
    %652 = vmatpush.msra.mxu0 0.0
    %v653 = vand.u32 %v530, 4294901760
    %v654 = vsub.f32 %v530, %v653
    %v655 = vand.u32 %v654, 4294901760
    %v656 = vsub.f32 %v654, %v655
    %v657 = vand.u32 %v656, 4294901760
    %658 = vmatpush.msra.mxu0 %v657
    %v659 = vand.u32 %v529, 4294901760
    %v660 = vsub.f32 %v529, %v659
    %v661 = vand.u32 %v660, 4294901760
    %v662 = vsub.f32 %v660, %v661
    %v663 = vand.u32 %v662, 4294901760
    %664 = vmatpush.msra.mxu0 %v663
    %v665 = vand.u32 %v533, 4294901760
    %666 = vmatmul.f32.gmra.mxu0 %v665
    %v667 = vpop.f32.mrf.mxu0
    %v668 = vadd.f32 %v581, %v667
    %v669 = vand.u32 %v536, 4294901760
    %670 = vmatmul.f32.gmra.mxu0 %v669
    %v671 = vpop.f32.mrf.mxu0
    %v672 = vadd.f32 %v589, %v671
    %v673 = vand.u32 %v539, 4294901760
    %674 = vmatmul.f32.gmra.mxu0 %v673
    %v675 = vpop.f32.mrf.mxu0
    %v676 = vadd.f32 %v597, %v675
    %v677 = vand.u32 %v542, 4294901760
    %678 = vmatmul.f32.gmra.mxu0 %v677
    %v679 = vpop.f32.mrf.mxu0
    %v680 = vadd.f32 %v605, %v679
    %v681 = vand.u32 %v545, 4294901760
    %682 = vmatmul.f32.gmra.mxu0 %v681
    %v683 = vpop.f32.mrf.mxu0
    %v684 = vadd.f32 %v613, %v683
    %v685 = vand.u32 %v548, 4294901760
    %686 = vmatmul.f32.gmra.mxu0 %v685
    %v687 = vpop.f32.mrf.mxu0
    %v688 = vadd.f32 %v621, %v687
    %v689 = vand.u32 %v551, 4294901760
    %690 = vmatmul.f32.gmra.mxu0 %v689
    %v691 = vpop.f32.mrf.mxu0
    %v692 = vadd.f32 %v629, %v691
    %v693 = vand.u32 %v554, 4294901760
    %694 = vmatmul.f32.gmra.mxu0 %v693
    %v695 = vpop.f32.mrf.mxu0
    %v696 = vadd.f32 %v637, %v695
    %697 = vdwg.mxu0
    %698 = vmatpush.msra.mxu0 0.0
    %699 = vmatpush.msra.mxu0 0.0
    %700 = vmatpush.msra.mxu0 0.0
    %701 = vmatpush.msra.mxu0 0.0
    %702 = vmatpush.msra.mxu0 0.0
    %703 = vmatpush.msra.mxu0 0.0
    %704 = vmatpush.msra.mxu0 0.0
    %705 = vmatpush.msra.mxu0 0.0
    %706 = vmatpush.msra.mxu0 0.0
    %707 = vmatpush.msra.mxu0 0.0
    %708 = vmatpush.msra.mxu0 0.0
    %709 = vmatpush.msra.mxu0 0.0
    %710 = vmatpush.msra.mxu0 0.0
    %711 = vmatpush.msra.mxu0 0.0
    %v712 = vand.u32 %v530, 4294901760
    %v713 = vsub.f32 %v530, %v712
    %714 = vmatpush.msra.mxu0 %v713
    %v715 = vand.u32 %v529, 4294901760
    %v716 = vsub.f32 %v529, %v715
    %717 = vmatpush.msra.mxu0 %v716
    %v718 = vand.u32 %v533, 4294901760
    %v719 = vsub.f32 %v533, %v718
    %720 = vmatmul.f32.gmra.mxu0 %v719
    %v721 = vpop.f32.mrf.mxu0
    %v722 = vadd.f32 %v668, %v721
    %v723 = vand.u32 %v536, 4294901760
    %v724 = vsub.f32 %v536, %v723
    %725 = vmatmul.f32.gmra.mxu0 %v724
    %v726 = vpop.f32.mrf.mxu0
    %v727 = vadd.f32 %v672, %v726
    %v728 = vand.u32 %v539, 4294901760
    %v729 = vsub.f32 %v539, %v728
    %730 = vmatmul.f32.gmra.mxu0 %v729
    %v731 = vpop.f32.mrf.mxu0
    %v732 = vadd.f32 %v676, %v731
    %v733 = vand.u32 %v542, 4294901760
    %v734 = vsub.f32 %v542, %v733
    %735 = vmatmul.f32.gmra.mxu0 %v734
    %v736 = vpop.f32.mrf.mxu0
    %v737 = vadd.f32 %v680, %v736
    %v738 = vand.u32 %v545, 4294901760
    %v739 = vsub.f32 %v545, %v738
    %740 = vmatmul.f32.gmra.mxu0 %v739
    %v741 = vpop.f32.mrf.mxu0
    %v742 = vadd.f32 %v684, %v741
    %v743 = vand.u32 %v548, 4294901760
    %v744 = vsub.f32 %v548, %v743
    %745 = vmatmul.f32.gmra.mxu0 %v744
    %v746 = vpop.f32.mrf.mxu0
    %v747 = vadd.f32 %v688, %v746
    %v748 = vand.u32 %v551, 4294901760
    %v749 = vsub.f32 %v551, %v748
    %750 = vmatmul.f32.gmra.mxu0 %v749
    %v751 = vpop.f32.mrf.mxu0
    %v752 = vadd.f32 %v692, %v751
    %v753 = vand.u32 %v554, 4294901760
    %v754 = vsub.f32 %v554, %v753
    %755 = vmatmul.f32.gmra.mxu0 %v754
    %v756 = vpop.f32.mrf.mxu0
    %v757 = vadd.f32 %v696, %v756
    %758 = vdwg.mxu0
    %759 = vmatpush.msra.mxu0 0.0
    %760 = vmatpush.msra.mxu0 0.0
    %761 = vmatpush.msra.mxu0 0.0
    %762 = vmatpush.msra.mxu0 0.0
    %763 = vmatpush.msra.mxu0 0.0
    %764 = vmatpush.msra.mxu0 0.0
    %765 = vmatpush.msra.mxu0 0.0
    %766 = vmatpush.msra.mxu0 0.0
    %767 = vmatpush.msra.mxu0 0.0
    %768 = vmatpush.msra.mxu0 0.0
    %769 = vmatpush.msra.mxu0 0.0
    %770 = vmatpush.msra.mxu0 0.0
    %771 = vmatpush.msra.mxu0 0.0
    %772 = vmatpush.msra.mxu0 0.0
    %v773 = vand.u32 %v530, 4294901760
    %774 = vmatpush.msra.mxu0 %v773
    %v775 = vand.u32 %v529, 4294901760
    %776 = vmatpush.msra.mxu0 %v775
    %v777 = vand.u32 %v533, 4294901760
    %v778 = vsub.f32 %v533, %v777
    %v779 = vand.u32 %v778, 4294901760
    %780 = vmatmul.f32.gmra.mxu0 %v779
    %v781 = vpop.f32.mrf.mxu0
    %v782 = vadd.f32 %v722, %v781
    %v783 = vand.u32 %v536, 4294901760
    %v784 = vsub.f32 %v536, %v783
    %v785 = vand.u32 %v784, 4294901760
    %786 = vmatmul.f32.gmra.mxu0 %v785
    %v787 = vpop.f32.mrf.mxu0
    %v788 = vadd.f32 %v727, %v787
    %v789 = vand.u32 %v539, 4294901760
    %v790 = vsub.f32 %v539, %v789
    %v791 = vand.u32 %v790, 4294901760
    %792 = vmatmul.f32.gmra.mxu0 %v791
    %v793 = vpop.f32.mrf.mxu0
    %v794 = vadd.f32 %v732, %v793
    %v795 = vand.u32 %v542, 4294901760
    %v796 = vsub.f32 %v542, %v795
    %v797 = vand.u32 %v796, 4294901760
    %798 = vmatmul.f32.gmra.mxu0 %v797
    %v799 = vpop.f32.mrf.mxu0
    %v800 = vadd.f32 %v737, %v799
    %v801 = vand.u32 %v545, 4294901760
    %v802 = vsub.f32 %v545, %v801
    %v803 = vand.u32 %v802, 4294901760
    %804 = vmatmul.f32.gmra.mxu0 %v803
    %v805 = vpop.f32.mrf.mxu0
    %v806 = vadd.f32 %v742, %v805
    %v807 = vand.u32 %v548, 4294901760
    %v808 = vsub.f32 %v548, %v807
    %v809 = vand.u32 %v808, 4294901760
    %810 = vmatmul.f32.gmra.mxu0 %v809
    %v811 = vpop.f32.mrf.mxu0
    %v812 = vadd.f32 %v747, %v811
    %v813 = vand.u32 %v551, 4294901760
    %v814 = vsub.f32 %v551, %v813
    %v815 = vand.u32 %v814, 4294901760
    %816 = vmatmul.f32.gmra.mxu0 %v815
    %v817 = vpop.f32.mrf.mxu0
    %v818 = vadd.f32 %v752, %v817
    %v819 = vand.u32 %v554, 4294901760
    %v820 = vsub.f32 %v554, %v819
    %v821 = vand.u32 %v820, 4294901760
    %822 = vmatmul.f32.gmra.mxu0 %v821
    %v823 = vpop.f32.mrf.mxu0
    %v824 = vadd.f32 %v757, %v823
    %825 = vdwg.mxu0
    %826 = vmatpush.msra.mxu0 0.0
    %827 = vmatpush.msra.mxu0 0.0
    %828 = vmatpush.msra.mxu0 0.0
    %829 = vmatpush.msra.mxu0 0.0
    %830 = vmatpush.msra.mxu0 0.0
    %831 = vmatpush.msra.mxu0 0.0
    %832 = vmatpush.msra.mxu0 0.0
    %833 = vmatpush.msra.mxu0 0.0
    %834 = vmatpush.msra.mxu0 0.0
    %835 = vmatpush.msra.mxu0 0.0
    %836 = vmatpush.msra.mxu0 0.0
    %837 = vmatpush.msra.mxu0 0.0
    %838 = vmatpush.msra.mxu0 0.0
    %839 = vmatpush.msra.mxu0 0.0
    %v840 = vand.u32 %v530, 4294901760
    %v841 = vsub.f32 %v530, %v840
    %v842 = vand.u32 %v841, 4294901760
    %843 = vmatpush.msra.mxu0 %v842
    %v844 = vand.u32 %v529, 4294901760
    %v845 = vsub.f32 %v529, %v844
    %v846 = vand.u32 %v845, 4294901760
    %847 = vmatpush.msra.mxu0 %v846
    %v848 = vand.u32 %v533, 4294901760
    %849 = vmatmul.f32.gmra.mxu0 %v848
    %v850 = vpop.f32.mrf.mxu0
    %v851 = vadd.f32 %v782, %v850
    %v852 = vand.u32 %v536, 4294901760
    %853 = vmatmul.f32.gmra.mxu0 %v852
    %v854 = vpop.f32.mrf.mxu0
    %v855 = vadd.f32 %v788, %v854
    %v856 = vand.u32 %v539, 4294901760
    %857 = vmatmul.f32.gmra.mxu0 %v856
    %v858 = vpop.f32.mrf.mxu0
    %v859 = vadd.f32 %v794, %v858
    %v860 = vand.u32 %v542, 4294901760
    %861 = vmatmul.f32.gmra.mxu0 %v860
    %v862 = vpop.f32.mrf.mxu0
    %v863 = vadd.f32 %v800, %v862
    %v864 = vand.u32 %v545, 4294901760
    %865 = vmatmul.f32.gmra.mxu0 %v864
    %v866 = vpop.f32.mrf.mxu0
    %v867 = vadd.f32 %v806, %v866
    %v868 = vand.u32 %v548, 4294901760
    %869 = vmatmul.f32.gmra.mxu0 %v868
    %v870 = vpop.f32.mrf.mxu0
    %v871 = vadd.f32 %v812, %v870
    %v872 = vand.u32 %v551, 4294901760
    %873 = vmatmul.f32.gmra.mxu0 %v872
    %v874 = vpop.f32.mrf.mxu0
    %v875 = vadd.f32 %v818, %v874
    %v876 = vand.u32 %v554, 4294901760
    %877 = vmatmul.f32.gmra.mxu0 %v876
    %v878 = vpop.f32.mrf.mxu0
    %v879 = vadd.f32 %v824, %v878
    %880 = vdwg.mxu0
    %881 = vmatpush.msra.mxu0 0.0
    %882 = vmatpush.msra.mxu0 0.0
    %883 = vmatpush.msra.mxu0 0.0
    %884 = vmatpush.msra.mxu0 0.0
    %885 = vmatpush.msra.mxu0 0.0
    %886 = vmatpush.msra.mxu0 0.0
    %887 = vmatpush.msra.mxu0 0.0
    %888 = vmatpush.msra.mxu0 0.0
    %889 = vmatpush.msra.mxu0 0.0
    %890 = vmatpush.msra.mxu0 0.0
    %891 = vmatpush.msra.mxu0 0.0
    %892 = vmatpush.msra.mxu0 0.0
    %893 = vmatpush.msra.mxu0 0.0
    %894 = vmatpush.msra.mxu0 0.0
    %v895 = vand.u32 %v530, 4294901760
    %896 = vmatpush.msra.mxu0 %v895
    %v897 = vand.u32 %v529, 4294901760
    %898 = vmatpush.msra.mxu0 %v897
    %v899 = vand.u32 %v533, 4294901760
    %900 = vmatmul.f32.gmra.mxu0 %v899
    %v901 = vpop.f32.mrf.mxu0
    %v902 = vadd.f32 %v851, %v901
    %v903 = vand.u32 %v536, 4294901760
    %904 = vmatmul.f32.gmra.mxu0 %v903
    %v905 = vpop.f32.mrf.mxu0
    %v906 = vadd.f32 %v855, %v905
    %v907 = vand.u32 %v539, 4294901760
    %908 = vmatmul.f32.gmra.mxu0 %v907
    %v909 = vpop.f32.mrf.mxu0
    %v910 = vadd.f32 %v859, %v909
    %v911 = vand.u32 %v542, 4294901760
    %912 = vmatmul.f32.gmra.mxu0 %v911
    %v913 = vpop.f32.mrf.mxu0
    %v914 = vadd.f32 %v863, %v913
    %v915 = vand.u32 %v545, 4294901760
    %916 = vmatmul.f32.gmra.mxu0 %v915
    %v917 = vpop.f32.mrf.mxu0
    %v918 = vadd.f32 %v867, %v917
    %v919 = vand.u32 %v548, 4294901760
    %920 = vmatmul.f32.gmra.mxu0 %v919
    %v921 = vpop.f32.mrf.mxu0
    %v922 = vadd.f32 %v871, %v921
    %v923 = vand.u32 %v551, 4294901760
    %924 = vmatmul.f32.gmra.mxu0 %v923
    %v925 = vpop.f32.mrf.mxu0
    %v926 = vadd.f32 %v875, %v925
    %v927 = vand.u32 %v554, 4294901760
    %928 = vmatmul.f32.gmra.mxu0 %v927
    %v929 = vpop.f32.mrf.mxu0
    %v930 = vadd.f32 %v879, %v929
    %931 = vdwg.mxu0
    %v932 = vld [vmem:[%s2] sm:$0xff]
    %v933 = vld [vmem:[%s2 + $0x8] sm:$0xff]
    %v934 = vld [vmem:[%s2 + $0x10] sm:$0xff]
    %v935 = vld [vmem:[%s2 + $0x18] sm:$0xff]
    %v936 = vld [vmem:[%s2 + $0x20] sm:$0xff]
    %v937 = vld [vmem:[%s2 + $0x28] sm:$0xff]
    %v938 = vld [vmem:[%s2 + $0x30] sm:$0xff]
    %v939 = vld [vmem:[%s2 + $0x38] sm:$0xff]
    %941 = vset.pattern.permute.xlu0 0
    %942 = vperm.xlu0 %941, %v932
    %v943 = vpop.permute.xlu0 %942
    %946 = vset.pattern.permute.xlu0 0
    %947 = vperm.xlu0 %946, %v933
    %v948 = vpop.permute.xlu0 %947
    %951 = vset.pattern.permute.xlu0 0
    %952 = vperm.xlu0 %951, %v934
    %v953 = vpop.permute.xlu0 %952
    %956 = vset.pattern.permute.xlu0 0
    %957 = vperm.xlu0 %956, %v935
    %v958 = vpop.permute.xlu0 %957
    %961 = vset.pattern.permute.xlu0 0
    %962 = vperm.xlu0 %961, %v936
    %v963 = vpop.permute.xlu0 %962
    %966 = vset.pattern.permute.xlu0 0
    %967 = vperm.xlu0 %966, %v937
    %v968 = vpop.permute.xlu0 %967
    %971 = vset.pattern.permute.xlu0 0
    %972 = vperm.xlu0 %971, %v938
    %v973 = vpop.permute.xlu0 %972
    %976 = vset.pattern.permute.xlu0 0
    %977 = vperm.xlu0 %976, %v939
    %v978 = vpop.permute.xlu0 %977
    %v980 = vmul.f32 %v902, %v943
    %v981 = vmul.f32 %v906, %v948
    %v982 = vmul.f32 %v910, %v953
    %v983 = vmul.f32 %v914, %v958
    %v984 = vmul.f32 %v918, %v963
    %v985 = vmul.f32 %v922, %v968
    %v986 = vmul.f32 %v926, %v973
    %v987 = vmul.f32 %v930, %v978
    %988 = vst [vmem:[#allocation2] sm:$0xff] %v980
    %989 = vst [vmem:[#allocation2 + $0x8] sm:$0xff] %v981
    %990 = vst [vmem:[#allocation2 + $0x10] sm:$0xff] %v982
    %991 = vst [vmem:[#allocation2 + $0x18] sm:$0xff] %v983
    %992 = vst [vmem:[#allocation2 + $0x20] sm:$0xff] %v984
    %993 = vst [vmem:[#allocation2 + $0x28] sm:$0xff] %v985
    %994 = vst [vmem:[#allocation2 + $0x30] sm:$0xff] %v986
    %995 = vst [vmem:[#allocation2 + $0x38] sm:$0xff] %v987
    // Predicated region
    $region14: #{smooth_upsample.1} parent=1 // pred_check
      _
    $region15: #{smooth_upsample.1} parent=1 // pred_check_branch
      %997 = sbr.rel (0) target = $region17
    $region16: #{smooth_upsample.1} parent=1 // pred_region
      %999 = vsyncadd [#allocation3], 0
      %s1000 = sshll.u32 [#allocation2], 4
      %s1001 = int_to_ptr.vmem [resolvable:$true] %s1000
      %s1002 = sshll.u32 %s3, 4
      %s1003 = int_to_ptr.hbm [resolvable:$true] %s1002
      %1008 = dma.vmem_to_hbm [thread:$0]  %s1001, 1024, %s1003, [#allocation3], 128, 128, 8
    $region17: #{smooth_upsample.1} parent=1 // pred_fallthru
      _
    // Predicated region
    $region18: #{smooth_upsample.1} parent=1 // pred_check
      _
    $region19: #{smooth_upsample.1} parent=1 // pred_check_branch
      %1010 = sbr.rel (0) target = $region21
    $region20: #{smooth_upsample.1} parent=1 // pred_region
      %1012 = dma.done [#allocation3], 1024
    $region21: #{smooth_upsample.1} parent=1 // pred_fallthru
      _
    %1013 = vsyncpa [#allocation3], 1

</llo_original>
